<compile_context>
chip_gen: v5e
topology: v5e:2x2
jax: 0.10.0
libtpu: 0.0.40
codegen_flags: <defaults>
</compile_context>

<pallas_src>
import functools

import jax
import jax.numpy as jnp
from jax import lax
from jax.experimental import pallas as pl
from jax.experimental.pallas import tpu as pltpu

LN_EPS = 1e-5


# ----------------------------- fused kernel -----------------------------------

def _fused_attention_kernel(x_ref, g_ref, b_ref, wqkv_ref, wo_ref, bo_ref,
                            o_ref, *, heads, dim_head, scale):
    n = x_ref.shape[1]
    dh = dim_head
    inner = heads * dh
    tpb = n // heads          # tokens per head's contiguous token block

    # ---- LayerNorm (f32, biased variance, matches torch.nn.LayerNorm) ---------
    x = x_ref[0].astype(jnp.float32)                         # (N, D)
    mu = jnp.mean(x, axis=-1, keepdims=True)
    var = jnp.mean((x - mu) ** 2, axis=-1, keepdims=True)
    xn = (x - mu) * lax.rsqrt(var + LN_EPS)
    xn = xn * g_ref[...] + b_ref[...]                        # (N, D)

    # ---- fused QKV projection: one wide MXU matmul, f32 accumulation ----------
    qkv = jnp.dot(xn.astype(jnp.bfloat16), wqkv_ref[...],
                  preferred_element_type=jnp.float32)        # (N, 3*inner)

    # ---- raw row-major .view() head split via STATIC slices --------------------
    # For head h the raw view uses token block T_h = [h*tpb, (h+1)*tpb) crossed
    # with all `heads` lane blocks of width dh.  Attention is invariant under an
    # identical re-ordering of the shared q/k/v rows, so we stack the rows
    # s-major (cheap static slices) instead of the interleaved .view() order and
    # undo it with the matching static scatter below.  No permutation matmuls.
    q_h, k_h, v_h = [], [], []
    for h in range(heads):
        rows = qkv[h * tpb:(h + 1) * tpb, :]                 # (tpb, 3*inner)
        q_h.append(jnp.concatenate(
            [rows[:, s * dh:(s + 1) * dh] for s in range(heads)], axis=0))
        k_h.append(jnp.concatenate(
            [rows[:, inner + s * dh:inner + (s + 1) * dh]
             for s in range(heads)], axis=0))
        v_h.append(jnp.concatenate(
            [rows[:, 2 * inner + s * dh:2 * inner + (s + 1) * dh]
             for s in range(heads)], axis=0))
    q3 = (jnp.stack(q_h, axis=0) * scale).astype(jnp.bfloat16)   # (heads, N, dh)
    k3 = jnp.stack(k_h, axis=0).astype(jnp.bfloat16)             # (heads, N, dh)
    v3 = jnp.stack(v_h, axis=0).astype(jnp.bfloat16)             # (heads, N, dh)

    # ---- head-batched scaled-dot-product attention ------------------------------
    scores = jnp.einsum('hid,hjd->hij', q3, k3,
                        preferred_element_type=jnp.float32)      # (heads, N, N)
    scores = scores - jnp.max(scores, axis=-1, keepdims=True)
    p = jnp.exp(scores)                                          # unnormalised
    denom = jnp.sum(p, axis=-1, keepdims=True)                   # (heads, N, 1)
    pv = jnp.einsum('hij,hjd->hid', p.astype(jnp.bfloat16), v3,
                    preferred_element_type=jnp.float32)          # (heads, N, dh)
    # deferred softmax normalisation: scale the (N,dh) result, not the (N,N) probs
    o3 = pv * pl.reciprocal(denom, approx=True)

    # ---- inverse raw .view(): static scatter back to (N, heads*dh) -------------
    out_rows = []
    for h in range(heads):
        out_rows.append(jnp.concatenate(
            [o3[h, s * tpb:(s + 1) * tpb, :] for s in range(heads)], axis=1))
    attn_flat = jnp.concatenate(out_rows, axis=0)                # (N, inner)

    # ---- output projection (Linear with bias); Dropout(p=0.0) == identity ------
    out = jnp.dot(attn_flat.astype(jnp.bfloat16), wo_ref[...],
                  preferred_element_type=jnp.float32) + bo_ref[...]
    o_ref[0] = out.astype(o_ref.dtype)


# ----------------------------- wrapper ----------------------------------------

def attention_forward(x, params, *, heads, dim_head):
    B, N, D = x.shape
    inner = heads * dim_head
    # TODO(synk): for N % heads != 0 a permutation-based fallback would be needed.
    assert N % heads == 0, "contiguous-token head split requires N % heads == 0"

    gamma = params["ln_gamma"].reshape(1, D).astype(jnp.float32)
    beta = params["ln_beta"].reshape(1, D).astype(jnp.float32)
    bo = params["bo"].reshape(1, D).astype(jnp.float32)

    # One wide QKV weight [wq | wk | wv]; scale is applied in f32 in-kernel.
    w_qkv = jnp.concatenate(
        [params["wq"], params["wk"], params["wv"]], axis=1
    ).astype(jnp.bfloat16)                                   # (D, 3*inner)
    wo = params["wo"].astype(jnp.bfloat16)                   # (inner, D)

    kernel = functools.partial(_fused_attention_kernel, heads=heads,
                               dim_head=dim_head,
                               scale=float(dim_head) ** (-0.5))

    flops = B * (2 * N * D * 3 * inner            # QKV projection
                 + 4 * heads * N * N * dim_head   # scores + probs @ V
                 + 2 * N * inner * D)             # output projection
    bytes_accessed = (B * N * D * 4               # x
                      + D * 3 * inner * 2         # w_qkv (bf16)
                      + inner * D * 2             # wo (bf16)
                      + 3 * D * 4                 # gamma, beta, bo
                      + B * N * D * 4)            # out
    cost = pl.CostEstimate(flops=flops,
                           transcendentals=B * heads * N * N,
                           bytes_accessed=bytes_accessed)

    return pl.pallas_call(
        kernel,
        out_shape=jax.ShapeDtypeStruct((B, N, D), jnp.float32),
        grid=(B,),
        in_specs=[
            pl.BlockSpec((1, N, D), lambda b: (b, 0, 0)),    # x
            pl.BlockSpec((1, D), lambda b: (0, 0)),          # ln gamma
            pl.BlockSpec((1, D), lambda b: (0, 0)),          # ln beta
            pl.BlockSpec((D, 3 * inner), lambda b: (0, 0)),  # fused qkv weight
            pl.BlockSpec((inner, D), lambda b: (0, 0)),      # wo
            pl.BlockSpec((1, D), lambda b: (0, 0)),          # bo
        ],
        out_specs=pl.BlockSpec((1, N, D), lambda b: (b, 0, 0)),
        compiler_params=pltpu.CompilerParams(
            dimension_semantics=("parallel",),
            vmem_limit_bytes=32 * 1024 * 1024),
        cost_estimate=cost,
    )(x, gamma, beta, w_qkv, wo, bo)


# ----------------------------- pure-JAX reference ------------------------------

def attention_reference(x, params, *, heads, dim_head):
    B, N, D = x.shape
    inner = heads * dim_head
    scale = float(dim_head) ** (-0.5)
    mu = jnp.mean(x, axis=-1, keepdims=True)
    var = jnp.mean((x - mu) ** 2, axis=-1, keepdims=True)
    xn = (x - mu) / jnp.sqrt(var + LN_EPS) * params["ln_gamma"] + params["ln_beta"]
    q = xn @ params["wq"]
    k = xn @ params["wk"]
    v = xn @ params["wv"]
    # The module's raw row-major .view() head split (NOT a transpose-based split).
    q = q.reshape(B, heads, N, dim_head)
    k = k.reshape(B, heads, N, dim_head)
    v = v.reshape(B, heads, N, dim_head)
    s = jnp.einsum("bhid,bhjd->bhij", q, k) * scale
    p = jax.nn.softmax(s, axis=-1)
    o = jnp.einsum("bhij,bhjd->bhid", p, v)
    o = o.reshape(B, N, inner)
    return o @ params["wo"] + params["bo"]


# ----------------------------- main --------------------------------------------

if __name__ == "__main__":
    B, N, D = 2, 8, 32
    HEADS, DIM_HEAD = 4, 16
    INNER = HEADS * DIM_HEAD

    key = jax.random.PRNGKey(0)
    kx, kq, kk, kv, ko, kb = jax.random.split(key, 6)

    x = jax.random.normal(kx, (B, N, D), dtype=jnp.float32)
    params = {
        "ln_gamma": jnp.ones((D,), jnp.float32),
        "ln_beta": jnp.zeros((D,), jnp.float32),
        # Linear weights, pre-transposed to (in, out).
        "wq": jax.random.normal(kq, (D, INNER), jnp.float32) * 0.05,
        "wk": jax.random.normal(kk, (D, INNER), jnp.float32) * 0.05,
        "wv": jax.random.normal(kv, (D, INNER), jnp.float32) * 0.05,
        "wo": jax.random.normal(ko, (INNER, D), jnp.float32) * 0.05,
        "bo": jax.random.normal(kb, (D,), jnp.float32) * 0.05,
    }

    out = attention_forward(x, params, heads=HEADS, dim_head=DIM_HEAD)
    out = jax.block_until_ready(out)

    ref = attention_reference(x, params, heads=HEADS, dim_head=DIM_HEAD)
    assert out.shape == (B, N, D)
    # bf16 MXU operands + approx reciprocal -> loosened tolerance.
    assert jnp.allclose(out, ref, atol=2e-2, rtol=2e-2), "mismatch vs reference"

    print("KERNEL_OK")
</pallas_src>

<mosaic_0001>
module attributes {stable_mosaic.version = 11 : i64} {
  func.func @_fused_attention_kernel(%arg0: i32, %arg1: memref<1x8x32xf32, #tpu.memory_space<vmem>>, %arg2: memref<1x32xf32, #tpu.memory_space<vmem>>, %arg3: memref<1x32xf32, #tpu.memory_space<vmem>>, %arg4: memref<32x192xbf16, #tpu.memory_space<vmem>>, %arg5: memref<64x32xbf16, #tpu.memory_space<vmem>>, %arg6: memref<1x32xf32, #tpu.memory_space<vmem>>, %arg7: memref<1x8x32xf32, #tpu.memory_space<vmem>>) attributes {dimension_semantics = [#tpu.dimension_semantics<parallel>], iteration_bounds = array<i64: 2>, scalar_prefetch = 0 : i64, scratch_operands = 0 : i64, tpu.core_type = #tpu.core_type<tc>, window_params = [{transform_indices = @transform_0, window_bounds = array<i64: 1, 8, 32>}, {pipeline_mode = #tpu.pipeline_mode<synchronous>, transform_indices = @transform_1, window_bounds = array<i64: 1, 32>}, {pipeline_mode = #tpu.pipeline_mode<synchronous>, transform_indices = @transform_2, window_bounds = array<i64: 1, 32>}, {pipeline_mode = #tpu.pipeline_mode<synchronous>, transform_indices = @transform_3, window_bounds = array<i64: 32, 192>}, {pipeline_mode = #tpu.pipeline_mode<synchronous>, transform_indices = @transform_4, window_bounds = array<i64: 64, 32>}, {pipeline_mode = #tpu.pipeline_mode<synchronous>, transform_indices = @transform_5, window_bounds = array<i64: 1, 32>}, {transform_indices = @transform_6, window_bounds = array<i64: 1, 8, 32>}]} {
    %c0 = arith.constant 0 : index
    %c0_0 = arith.constant 0 : index
    %c0_1 = arith.constant 0 : index
    %0 = vector.load %arg1[%c0, %c0_0, %c0_1] : memref<1x8x32xf32, #tpu.memory_space<vmem>>, vector<1x8x32xf32>
    %1 = vector.shape_cast %0 : vector<1x8x32xf32> to vector<8x32xf32>
    %cst = arith.constant dense<0.000000e+00> : vector<8xf32>
    %2 = vector.multi_reduction <add>, %1, %cst [1] : vector<8x32xf32> to vector<8xf32>
    %3 = vector.shape_cast %2 : vector<8xf32> to vector<8x1xf32>
    %cst_2 = arith.constant 3.200000e+01 : f32
    %4 = vector.broadcast %cst_2 : f32 to vector<8x1xf32>
    %5 = arith.divf %3, %4 : vector<8x1xf32>
    %6 = vector.broadcast %5 : vector<8x1xf32> to vector<8x32xf32>
    %7 = arith.subf %1, %6 : vector<8x32xf32>
    %8 = arith.mulf %7, %7 : vector<8x32xf32>
    %cst_3 = arith.constant dense<0.000000e+00> : vector<8xf32>
    %9 = vector.multi_reduction <add>, %8, %cst_3 [1] : vector<8x32xf32> to vector<8xf32>
    %10 = vector.shape_cast %9 : vector<8xf32> to vector<8x1xf32>
    %cst_4 = arith.constant 3.200000e+01 : f32
    %11 = vector.broadcast %cst_4 : f32 to vector<8x1xf32>
    %12 = arith.divf %10, %11 : vector<8x1xf32>
    %13 = vector.broadcast %5 : vector<8x1xf32> to vector<8x32xf32>
    %14 = arith.subf %1, %13 : vector<8x32xf32>
    %cst_5 = arith.constant 9.99999974E-6 : f32
    %15 = vector.broadcast %cst_5 : f32 to vector<8x1xf32>
    %16 = arith.addf %12, %15 : vector<8x1xf32>
    %17 = math.rsqrt %16 : vector<8x1xf32>
    %18 = vector.broadcast %17 : vector<8x1xf32> to vector<8x32xf32>
    %19 = arith.mulf %14, %18 : vector<8x32xf32>
    %c0_6 = arith.constant 0 : index
    %c0_7 = arith.constant 0 : index
    %20 = vector.load %arg2[%c0_6, %c0_7] : memref<1x32xf32, #tpu.memory_space<vmem>>, vector<1x32xf32>
    %21 = vector.broadcast %20 : vector<1x32xf32> to vector<8x32xf32>
    %22 = arith.mulf %19, %21 : vector<8x32xf32>
    %c0_8 = arith.constant 0 : index
    %c0_9 = arith.constant 0 : index
    %23 = vector.load %arg3[%c0_8, %c0_9] : memref<1x32xf32, #tpu.memory_space<vmem>>, vector<1x32xf32>
    %24 = vector.broadcast %23 : vector<1x32xf32> to vector<8x32xf32>
    %25 = arith.addf %22, %24 : vector<8x32xf32>
    %26 = arith.truncf %25 : vector<8x32xf32> to vector<8x32xbf16>
    %c0_10 = arith.constant 0 : index
    %c0_11 = arith.constant 0 : index
    %27 = vector.load %arg4[%c0_10, %c0_11] : memref<32x192xbf16, #tpu.memory_space<vmem>>, vector<32x192xbf16>
    %cst_12 = arith.constant dense<0.000000e+00> : vector<8x192xf32>
    %28 = tpu.matmul %26, %27, %cst_12 {dimension_numbers = #tpu.dot_dimension_numbers<[1], [0], [0], [1], [0, 0, 1, 1], [], []>} : vector<8x32xbf16>, vector<32x192xbf16>, vector<8x192xf32> -> vector<8x192xf32>
    %29 = vector.extract_strided_slice %28 {offsets = [0, 0], sizes = [2, 192], strides = [1, 1]} : vector<8x192xf32> to vector<2x192xf32>
    %30 = vector.extract_strided_slice %29 {offsets = [0, 0], sizes = [2, 16], strides = [1, 1]} : vector<2x192xf32> to vector<2x16xf32>
    %31 = vector.extract_strided_slice %29 {offsets = [0, 16], sizes = [2, 16], strides = [1, 1]} : vector<2x192xf32> to vector<2x16xf32>
    %32 = vector.extract_strided_slice %29 {offsets = [0, 32], sizes = [2, 16], strides = [1, 1]} : vector<2x192xf32> to vector<2x16xf32>
    %33 = vector.extract_strided_slice %29 {offsets = [0, 48], sizes = [2, 16], strides = [1, 1]} : vector<2x192xf32> to vector<2x16xf32>
    %34 = tpu.concatenate %30, %31, %32, %33 in 0 : vector<2x16xf32>, vector<2x16xf32>, vector<2x16xf32>, vector<2x16xf32> -> vector<8x16xf32>
    %35 = vector.extract_strided_slice %29 {offsets = [0, 64], sizes = [2, 16], strides = [1, 1]} : vector<2x192xf32> to vector<2x16xf32>
    %36 = vector.extract_strided_slice %29 {offsets = [0, 80], sizes = [2, 16], strides = [1, 1]} : vector<2x192xf32> to vector<2x16xf32>
    %37 = vector.extract_strided_slice %29 {offsets = [0, 96], sizes = [2, 16], strides = [1, 1]} : vector<2x192xf32> to vector<2x16xf32>
    %38 = vector.extract_strided_slice %29 {offsets = [0, 112], sizes = [2, 16], strides = [1, 1]} : vector<2x192xf32> to vector<2x16xf32>
    %39 = tpu.concatenate %35, %36, %37, %38 in 0 : vector<2x16xf32>, vector<2x16xf32>, vector<2x16xf32>, vector<2x16xf32> -> vector<8x16xf32>
    %40 = vector.extract_strided_slice %29 {offsets = [0, 128], sizes = [2, 16], strides = [1, 1]} : vector<2x192xf32> to vector<2x16xf32>
    %41 = vector.extract_strided_slice %29 {offsets = [0, 144], sizes = [2, 16], strides = [1, 1]} : vector<2x192xf32> to vector<2x16xf32>
    %42 = vector.extract_strided_slice %29 {offsets = [0, 160], sizes = [2, 16], strides = [1, 1]} : vector<2x192xf32> to vector<2x16xf32>
    %43 = vector.extract_strided_slice %29 {offsets = [0, 176], sizes = [2, 16], strides = [1, 1]} : vector<2x192xf32> to vector<2x16xf32>
    %44 = tpu.concatenate %40, %41, %42, %43 in 0 : vector<2x16xf32>, vector<2x16xf32>, vector<2x16xf32>, vector<2x16xf32> -> vector<8x16xf32>
    %45 = vector.extract_strided_slice %28 {offsets = [2, 0], sizes = [2, 192], strides = [1, 1]} : vector<8x192xf32> to vector<2x192xf32>
    %46 = vector.extract_strided_slice %45 {offsets = [0, 0], sizes = [2, 16], strides = [1, 1]} : vector<2x192xf32> to vector<2x16xf32>
    %47 = vector.extract_strided_slice %45 {offsets = [0, 16], sizes = [2, 16], strides = [1, 1]} : vector<2x192xf32> to vector<2x16xf32>
    %48 = vector.extract_strided_slice %45 {offsets = [0, 32], sizes = [2, 16], strides = [1, 1]} : vector<2x192xf32> to vector<2x16xf32>
    %49 = vector.extract_strided_slice %45 {offsets = [0, 48], sizes = [2, 16], strides = [1, 1]} : vector<2x192xf32> to vector<2x16xf32>
    %50 = tpu.concatenate %46, %47, %48, %49 in 0 : vector<2x16xf32>, vector<2x16xf32>, vector<2x16xf32>, vector<2x16xf32> -> vector<8x16xf32>
    %51 = vector.extract_strided_slice %45 {offsets = [0, 64], sizes = [2, 16], strides = [1, 1]} : vector<2x192xf32> to vector<2x16xf32>
    %52 = vector.extract_strided_slice %45 {offsets = [0, 80], sizes = [2, 16], strides = [1, 1]} : vector<2x192xf32> to vector<2x16xf32>
    %53 = vector.extract_strided_slice %45 {offsets = [0, 96], sizes = [2, 16], strides = [1, 1]} : vector<2x192xf32> to vector<2x16xf32>
    %54 = vector.extract_strided_slice %45 {offsets = [0, 112], sizes = [2, 16], strides = [1, 1]} : vector<2x192xf32> to vector<2x16xf32>
    %55 = tpu.concatenate %51, %52, %53, %54 in 0 : vector<2x16xf32>, vector<2x16xf32>, vector<2x16xf32>, vector<2x16xf32> -> vector<8x16xf32>
    %56 = vector.extract_strided_slice %45 {offsets = [0, 128], sizes = [2, 16], strides = [1, 1]} : vector<2x192xf32> to vector<2x16xf32>
    %57 = vector.extract_strided_slice %45 {offsets = [0, 144], sizes = [2, 16], strides = [1, 1]} : vector<2x192xf32> to vector<2x16xf32>
    %58 = vector.extract_strided_slice %45 {offsets = [0, 160], sizes = [2, 16], strides = [1, 1]} : vector<2x192xf32> to vector<2x16xf32>
    %59 = vector.extract_strided_slice %45 {offsets = [0, 176], sizes = [2, 16], strides = [1, 1]} : vector<2x192xf32> to vector<2x16xf32>
    %60 = tpu.concatenate %56, %57, %58, %59 in 0 : vector<2x16xf32>, vector<2x16xf32>, vector<2x16xf32>, vector<2x16xf32> -> vector<8x16xf32>
    %61 = vector.extract_strided_slice %28 {offsets = [4, 0], sizes = [2, 192], strides = [1, 1]} : vector<8x192xf32> to vector<2x192xf32>
    %62 = vector.extract_strided_slice %61 {offsets = [0, 0], sizes = [2, 16], strides = [1, 1]} : vector<2x192xf32> to vector<2x16xf32>
    %63 = vector.extract_strided_slice %61 {offsets = [0, 16], sizes = [2, 16], strides = [1, 1]} : vector<2x192xf32> to vector<2x16xf32>
    %64 = vector.extract_strided_slice %61 {offsets = [0, 32], sizes = [2, 16], strides = [1, 1]} : vector<2x192xf32> to vector<2x16xf32>
    %65 = vector.extract_strided_slice %61 {offsets = [0, 48], sizes = [2, 16], strides = [1, 1]} : vector<2x192xf32> to vector<2x16xf32>
    %66 = tpu.concatenate %62, %63, %64, %65 in 0 : vector<2x16xf32>, vector<2x16xf32>, vector<2x16xf32>, vector<2x16xf32> -> vector<8x16xf32>
    %67 = vector.extract_strided_slice %61 {offsets = [0, 64], sizes = [2, 16], strides = [1, 1]} : vector<2x192xf32> to vector<2x16xf32>
    %68 = vector.extract_strided_slice %61 {offsets = [0, 80], sizes = [2, 16], strides = [1, 1]} : vector<2x192xf32> to vector<2x16xf32>
    %69 = vector.extract_strided_slice %61 {offsets = [0, 96], sizes = [2, 16], strides = [1, 1]} : vector<2x192xf32> to vector<2x16xf32>
    %70 = vector.extract_strided_slice %61 {offsets = [0, 112], sizes = [2, 16], strides = [1, 1]} : vector<2x192xf32> to vector<2x16xf32>
    %71 = tpu.concatenate %67, %68, %69, %70 in 0 : vector<2x16xf32>, vector<2x16xf32>, vector<2x16xf32>, vector<2x16xf32> -> vector<8x16xf32>
    %72 = vector.extract_strided_slice %61 {offsets = [0, 128], sizes = [2, 16], strides = [1, 1]} : vector<2x192xf32> to vector<2x16xf32>
    %73 = vector.extract_strided_slice %61 {offsets = [0, 144], sizes = [2, 16], strides = [1, 1]} : vector<2x192xf32> to vector<2x16xf32>
    %74 = vector.extract_strided_slice %61 {offsets = [0, 160], sizes = [2, 16], strides = [1, 1]} : vector<2x192xf32> to vector<2x16xf32>
    %75 = vector.extract_strided_slice %61 {offsets = [0, 176], sizes = [2, 16], strides = [1, 1]} : vector<2x192xf32> to vector<2x16xf32>
    %76 = tpu.concatenate %72, %73, %74, %75 in 0 : vector<2x16xf32>, vector<2x16xf32>, vector<2x16xf32>, vector<2x16xf32> -> vector<8x16xf32>
    %77 = vector.extract_strided_slice %28 {offsets = [6, 0], sizes = [2, 192], strides = [1, 1]} : vector<8x192xf32> to vector<2x192xf32>
    %78 = vector.extract_strided_slice %77 {offsets = [0, 0], sizes = [2, 16], strides = [1, 1]} : vector<2x192xf32> to vector<2x16xf32>
    %79 = vector.extract_strided_slice %77 {offsets = [0, 16], sizes = [2, 16], strides = [1, 1]} : vector<2x192xf32> to vector<2x16xf32>
    %80 = vector.extract_strided_slice %77 {offsets = [0, 32], sizes = [2, 16], strides = [1, 1]} : vector<2x192xf32> to vector<2x16xf32>
    %81 = vector.extract_strided_slice %77 {offsets = [0, 48], sizes = [2, 16], strides = [1, 1]} : vector<2x192xf32> to vector<2x16xf32>
    %82 = tpu.concatenate %78, %79, %80, %81 in 0 : vector<2x16xf32>, vector<2x16xf32>, vector<2x16xf32>, vector<2x16xf32> -> vector<8x16xf32>
    %83 = vector.extract_strided_slice %77 {offsets = [0, 64], sizes = [2, 16], strides = [1, 1]} : vector<2x192xf32> to vector<2x16xf32>
    %84 = vector.extract_strided_slice %77 {offsets = [0, 80], sizes = [2, 16], strides = [1, 1]} : vector<2x192xf32> to vector<2x16xf32>
    %85 = vector.extract_strided_slice %77 {offsets = [0, 96], sizes = [2, 16], strides = [1, 1]} : vector<2x192xf32> to vector<2x16xf32>
    %86 = vector.extract_strided_slice %77 {offsets = [0, 112], sizes = [2, 16], strides = [1, 1]} : vector<2x192xf32> to vector<2x16xf32>
    %87 = tpu.concatenate %83, %84, %85, %86 in 0 : vector<2x16xf32>, vector<2x16xf32>, vector<2x16xf32>, vector<2x16xf32> -> vector<8x16xf32>
    %88 = vector.extract_strided_slice %77 {offsets = [0, 128], sizes = [2, 16], strides = [1, 1]} : vector<2x192xf32> to vector<2x16xf32>
    %89 = vector.extract_strided_slice %77 {offsets = [0, 144], sizes = [2, 16], strides = [1, 1]} : vector<2x192xf32> to vector<2x16xf32>
    %90 = vector.extract_strided_slice %77 {offsets = [0, 160], sizes = [2, 16], strides = [1, 1]} : vector<2x192xf32> to vector<2x16xf32>
    %91 = vector.extract_strided_slice %77 {offsets = [0, 176], sizes = [2, 16], strides = [1, 1]} : vector<2x192xf32> to vector<2x16xf32>
    %92 = tpu.concatenate %88, %89, %90, %91 in 0 : vector<2x16xf32>, vector<2x16xf32>, vector<2x16xf32>, vector<2x16xf32> -> vector<8x16xf32>
    %93 = vector.shape_cast %34 : vector<8x16xf32> to vector<1x8x16xf32>
    %94 = vector.shape_cast %50 : vector<8x16xf32> to vector<1x8x16xf32>
    %95 = vector.shape_cast %66 : vector<8x16xf32> to vector<1x8x16xf32>
    %96 = vector.shape_cast %82 : vector<8x16xf32> to vector<1x8x16xf32>
    %97 = tpu.concatenate %93, %94, %95, %96 in 0 : vector<1x8x16xf32>, vector<1x8x16xf32>, vector<1x8x16xf32>, vector<1x8x16xf32> -> vector<4x8x16xf32>
    %cst_13 = arith.constant 2.500000e-01 : f32
    %98 = vector.broadcast %cst_13 : f32 to vector<4x8x16xf32>
    %99 = arith.mulf %97, %98 : vector<4x8x16xf32>
    %100 = arith.truncf %99 : vector<4x8x16xf32> to vector<4x8x16xbf16>
    %101 = vector.shape_cast %39 : vector<8x16xf32> to vector<1x8x16xf32>
    %102 = vector.shape_cast %55 : vector<8x16xf32> to vector<1x8x16xf32>
    %103 = vector.shape_cast %71 : vector<8x16xf32> to vector<1x8x16xf32>
    %104 = vector.shape_cast %87 : vector<8x16xf32> to vector<1x8x16xf32>
    %105 = tpu.concatenate %101, %102, %103, %104 in 0 : vector<1x8x16xf32>, vector<1x8x16xf32>, vector<1x8x16xf32>, vector<1x8x16xf32> -> vector<4x8x16xf32>
    %106 = arith.truncf %105 : vector<4x8x16xf32> to vector<4x8x16xbf16>
    %107 = vector.shape_cast %44 : vector<8x16xf32> to vector<1x8x16xf32>
    %108 = vector.shape_cast %60 : vector<8x16xf32> to vector<1x8x16xf32>
    %109 = vector.shape_cast %76 : vector<8x16xf32> to vector<1x8x16xf32>
    %110 = vector.shape_cast %92 : vector<8x16xf32> to vector<1x8x16xf32>
    %111 = tpu.concatenate %107, %108, %109, %110 in 0 : vector<1x8x16xf32>, vector<1x8x16xf32>, vector<1x8x16xf32>, vector<1x8x16xf32> -> vector<4x8x16xf32>
    %112 = arith.truncf %111 : vector<4x8x16xf32> to vector<4x8x16xbf16>
    "tpu.trace_start"() <{level = 10 : i32, message = "hid,hjd->hij"}> : () -> ()
    %cst_14 = arith.constant dense<0.000000e+00> : vector<4x8x8xf32>
    %113 = tpu.matmul %100, %106, %cst_14 {dimension_numbers = #tpu.dot_dimension_numbers<[2], [2], [1], [1], [0, 0, 0, 1, 1, 1], [0], [0]>} : vector<4x8x16xbf16>, vector<4x8x16xbf16>, vector<4x8x8xf32> -> vector<4x8x8xf32>
    "tpu.trace_stop"() : () -> ()
    %cst_15 = arith.constant dense<0xFF800000> : vector<4x8xf32>
    %114 = vector.multi_reduction <maximumf>, %113, %cst_15 [2] : vector<4x8x8xf32> to vector<4x8xf32>
    %115 = vector.shape_cast %114 : vector<4x8xf32> to vector<4x8x1xf32>
    %116 = vector.broadcast %115 : vector<4x8x1xf32> to vector<4x8x8xf32>
    %117 = arith.subf %113, %116 : vector<4x8x8xf32>
    %118 = math.exp %117 : vector<4x8x8xf32>
    %cst_16 = arith.constant dense<0.000000e+00> : vector<4x8xf32>
    %119 = vector.multi_reduction <add>, %118, %cst_16 [2] : vector<4x8x8xf32> to vector<4x8xf32>
    %120 = vector.shape_cast %119 : vector<4x8xf32> to vector<4x8x1xf32>
    %121 = arith.truncf %118 : vector<4x8x8xf32> to vector<4x8x8xbf16>
    "tpu.trace_start"() <{level = 10 : i32, message = "hij,hjd->hid"}> : () -> ()
    %cst_17 = arith.constant dense<0.000000e+00> : vector<4x8x16xf32>
    %122 = tpu.matmul %121, %112, %cst_17 {dimension_numbers = #tpu.dot_dimension_numbers<[2], [1], [1], [2], [0, 0, 0, 1, 1, 2], [0], [0]>} : vector<4x8x8xbf16>, vector<4x8x16xbf16>, vector<4x8x16xf32> -> vector<4x8x16xf32>
    "tpu.trace_stop"() : () -> ()
    %123 = tpu.reciprocal %120 {approx = true} : vector<4x8x1xf32> -> vector<4x8x1xf32>
    %124 = vector.broadcast %123 : vector<4x8x1xf32> to vector<4x8x16xf32>
    %125 = arith.mulf %122, %124 : vector<4x8x16xf32>
    %126 = vector.extract_strided_slice %125 {offsets = [0, 0, 0], sizes = [1, 2, 16], strides = [1, 1, 1]} : vector<4x8x16xf32> to vector<1x2x16xf32>
    %127 = vector.shape_cast %126 : vector<1x2x16xf32> to vector<2x16xf32>
    %128 = vector.extract_strided_slice %125 {offsets = [0, 2, 0], sizes = [1, 2, 16], strides = [1, 1, 1]} : vector<4x8x16xf32> to vector<1x2x16xf32>
    %129 = vector.shape_cast %128 : vector<1x2x16xf32> to vector<2x16xf32>
    %130 = vector.extract_strided_slice %125 {offsets = [0, 4, 0], sizes = [1, 2, 16], strides = [1, 1, 1]} : vector<4x8x16xf32> to vector<1x2x16xf32>
    %131 = vector.shape_cast %130 : vector<1x2x16xf32> to vector<2x16xf32>
    %132 = vector.extract_strided_slice %125 {offsets = [0, 6, 0], sizes = [1, 2, 16], strides = [1, 1, 1]} : vector<4x8x16xf32> to vector<1x2x16xf32>
    %133 = vector.shape_cast %132 : vector<1x2x16xf32> to vector<2x16xf32>
    %134 = tpu.concatenate %127, %129, %131, %133 in 1 : vector<2x16xf32>, vector<2x16xf32>, vector<2x16xf32>, vector<2x16xf32> -> vector<2x64xf32>
    %135 = vector.extract_strided_slice %125 {offsets = [1, 0, 0], sizes = [1, 2, 16], strides = [1, 1, 1]} : vector<4x8x16xf32> to vector<1x2x16xf32>
    %136 = vector.shape_cast %135 : vector<1x2x16xf32> to vector<2x16xf32>
    %137 = vector.extract_strided_slice %125 {offsets = [1, 2, 0], sizes = [1, 2, 16], strides = [1, 1, 1]} : vector<4x8x16xf32> to vector<1x2x16xf32>
    %138 = vector.shape_cast %137 : vector<1x2x16xf32> to vector<2x16xf32>
    %139 = vector.extract_strided_slice %125 {offsets = [1, 4, 0], sizes = [1, 2, 16], strides = [1, 1, 1]} : vector<4x8x16xf32> to vector<1x2x16xf32>
    %140 = vector.shape_cast %139 : vector<1x2x16xf32> to vector<2x16xf32>
    %141 = vector.extract_strided_slice %125 {offsets = [1, 6, 0], sizes = [1, 2, 16], strides = [1, 1, 1]} : vector<4x8x16xf32> to vector<1x2x16xf32>
    %142 = vector.shape_cast %141 : vector<1x2x16xf32> to vector<2x16xf32>
    %143 = tpu.concatenate %136, %138, %140, %142 in 1 : vector<2x16xf32>, vector<2x16xf32>, vector<2x16xf32>, vector<2x16xf32> -> vector<2x64xf32>
    %144 = vector.extract_strided_slice %125 {offsets = [2, 0, 0], sizes = [1, 2, 16], strides = [1, 1, 1]} : vector<4x8x16xf32> to vector<1x2x16xf32>
    %145 = vector.shape_cast %144 : vector<1x2x16xf32> to vector<2x16xf32>
    %146 = vector.extract_strided_slice %125 {offsets = [2, 2, 0], sizes = [1, 2, 16], strides = [1, 1, 1]} : vector<4x8x16xf32> to vector<1x2x16xf32>
    %147 = vector.shape_cast %146 : vector<1x2x16xf32> to vector<2x16xf32>
    %148 = vector.extract_strided_slice %125 {offsets = [2, 4, 0], sizes = [1, 2, 16], strides = [1, 1, 1]} : vector<4x8x16xf32> to vector<1x2x16xf32>
    %149 = vector.shape_cast %148 : vector<1x2x16xf32> to vector<2x16xf32>
    %150 = vector.extract_strided_slice %125 {offsets = [2, 6, 0], sizes = [1, 2, 16], strides = [1, 1, 1]} : vector<4x8x16xf32> to vector<1x2x16xf32>
    %151 = vector.shape_cast %150 : vector<1x2x16xf32> to vector<2x16xf32>
    %152 = tpu.concatenate %145, %147, %149, %151 in 1 : vector<2x16xf32>, vector<2x16xf32>, vector<2x16xf32>, vector<2x16xf32> -> vector<2x64xf32>
    %153 = vector.extract_strided_slice %125 {offsets = [3, 0, 0], sizes = [1, 2, 16], strides = [1, 1, 1]} : vector<4x8x16xf32> to vector<1x2x16xf32>
    %154 = vector.shape_cast %153 : vector<1x2x16xf32> to vector<2x16xf32>
    %155 = vector.extract_strided_slice %125 {offsets = [3, 2, 0], sizes = [1, 2, 16], strides = [1, 1, 1]} : vector<4x8x16xf32> to vector<1x2x16xf32>
    %156 = vector.shape_cast %155 : vector<1x2x16xf32> to vector<2x16xf32>
    %157 = vector.extract_strided_slice %125 {offsets = [3, 4, 0], sizes = [1, 2, 16], strides = [1, 1, 1]} : vector<4x8x16xf32> to vector<1x2x16xf32>
    %158 = vector.shape_cast %157 : vector<1x2x16xf32> to vector<2x16xf32>
    %159 = vector.extract_strided_slice %125 {offsets = [3, 6, 0], sizes = [1, 2, 16], strides = [1, 1, 1]} : vector<4x8x16xf32> to vector<1x2x16xf32>
    %160 = vector.shape_cast %159 : vector<1x2x16xf32> to vector<2x16xf32>
    %161 = tpu.concatenate %154, %156, %158, %160 in 1 : vector<2x16xf32>, vector<2x16xf32>, vector<2x16xf32>, vector<2x16xf32> -> vector<2x64xf32>
    %162 = tpu.concatenate %134, %143, %152, %161 in 0 : vector<2x64xf32>, vector<2x64xf32>, vector<2x64xf32>, vector<2x64xf32> -> vector<8x64xf32>
    %163 = arith.truncf %162 : vector<8x64xf32> to vector<8x64xbf16>
    %c0_18 = arith.constant 0 : index
    %c0_19 = arith.constant 0 : index
    %164 = vector.load %arg5[%c0_18, %c0_19] : memref<64x32xbf16, #tpu.memory_space<vmem>>, vector<64x32xbf16>
    %cst_20 = arith.constant dense<0.000000e+00> : vector<8x32xf32>
    %165 = tpu.matmul %163, %164, %cst_20 {dimension_numbers = #tpu.dot_dimension_numbers<[1], [0], [0], [1], [0, 0, 1, 1], [], []>} : vector<8x64xbf16>, vector<64x32xbf16>, vector<8x32xf32> -> vector<8x32xf32>
    %c0_21 = arith.constant 0 : index
    %c0_22 = arith.constant 0 : index
    %166 = vector.load %arg6[%c0_21, %c0_22] : memref<1x32xf32, #tpu.memory_space<vmem>>, vector<1x32xf32>
    %167 = vector.broadcast %166 : vector<1x32xf32> to vector<8x32xf32>
    %168 = arith.addf %165, %167 : vector<8x32xf32>
    %c0_23 = arith.constant 0 : index
    %c0_24 = arith.constant 0 : index
    %c0_25 = arith.constant 0 : index
    %169 = vector.load %arg7[%c0_23, %c0_24, %c0_25] : memref<1x8x32xf32, #tpu.memory_space<vmem>>, vector<1x8x32xf32>
    %170 = vector.shape_cast %169 : vector<1x8x32xf32> to vector<8x32xf32>
    %171 = vector.shape_cast %168 : vector<8x32xf32> to vector<1x8x32xf32>
    tpu.vector_store %arg7[%c0_23, %c0_24, %c0_25], %171 {strides = array<i32>} : memref<1x8x32xf32, #tpu.memory_space<vmem>>, vector<1x8x32xf32>,
    return
  }
  func.func @transform_0(%arg0: i32) -> (i32, i32, i32) {
    %c0_i32 = arith.constant 0 : i32
    %c0_i32_0 = arith.constant 0 : i32
    %c0_i32_1 = arith.constant 0 : i32
    return %arg0, %c0_i32, %c0_i32_0 : i32, i32, i32
  }
  func.func @transform_1(%arg0: i32) -> (i32, i32) {
    %c0_i32 = arith.constant 0 : i32
    %c0_i32_0 = arith.constant 0 : i32
    %c0_i32_1 = arith.constant 0 : i32
    return %c0_i32, %c0_i32_0 : i32, i32
  }
  func.func @transform_2(%arg0: i32) -> (i32, i32) {
    %c0_i32 = arith.constant 0 : i32
    %c0_i32_0 = arith.constant 0 : i32
    %c0_i32_1 = arith.constant 0 : i32
    return %c0_i32, %c0_i32_0 : i32, i32
  }
  func.func @transform_3(%arg0: i32) -> (i32, i32) {
    %c0_i32 = arith.constant 0 : i32
    %c0_i32_0 = arith.constant 0 : i32
    %c0_i32_1 = arith.constant 0 : i32
    return %c0_i32, %c0_i32_0 : i32, i32
  }
  func.func @transform_4(%arg0: i32) -> (i32, i32) {
    %c0_i32 = arith.constant 0 : i32
    %c0_i32_0 = arith.constant 0 : i32
    %c0_i32_1 = arith.constant 0 : i32
    return %c0_i32, %c0_i32_0 : i32, i32
  }
  func.func @transform_5(%arg0: i32) -> (i32, i32) {
    %c0_i32 = arith.constant 0 : i32
    %c0_i32_0 = arith.constant 0 : i32
    %c0_i32_1 = arith.constant 0 : i32
    return %c0_i32, %c0_i32_0 : i32, i32
  }
  func.func @transform_6(%arg0: i32) -> (i32, i32, i32) {
    %c0_i32 = arith.constant 0 : i32
    %c0_i32_0 = arith.constant 0 : i32
    %c0_i32_1 = arith.constant 0 : i32
    return %arg0, %c0_i32, %c0_i32_0 : i32, i32, i32
  }
}

</mosaic_0001>

<llo_original>
// kernel: tpu_custom_call.1
$region0: #{tpu_custom_call.1}
  #allocation0 [shape = 'u32[]', space=smem, size = 0x4, offset = 0x4, fixed_abs, tag = 'smem constant byte address 0x4 - core index']
  #allocation1 [shape = 'u32[72,128]{1,0:T(1,128)}', space=vmem, size = 0x9000, scoped, tag = 'internal scratch']
  %s0 = inlined_call_operand.vmem [shape: f32[2,8,32], index: 0, kind: input, shape index: {}]
  %s1 = inlined_call_operand.vmem [shape: f32[1,32], index: 1, kind: input, shape index: {}]
  %s2 = inlined_call_operand.vmem [shape: f32[1,32], index: 2, kind: input, shape index: {}]
  %s3 = inlined_call_operand.vmem [shape: bf16[32,192], index: 3, kind: input, shape index: {}]
  %s4 = inlined_call_operand.vmem [shape: bf16[64,32], index: 4, kind: input, shape index: {}]
  %s5 = inlined_call_operand.vmem [shape: f32[1,32], index: 5, kind: input, shape index: {}]
  %s6 = inlined_call_operand.hbm [shape: f32[2,8,32], index: 6, kind: output, shape index: {}]
  %s7 = sld [smem:[#allocation0]]
  $region57: #{tpu_custom_call.1} parent=0
    _
  %s9 = ssub.s32 1, %s7
  %s10 = scalar_select 0, %s9, %s7
  $region1: #{tpu_custom_call.1} parent=0
    #allocation2 [shape = 'u8[8192]{0}', space=vmem, size = 0x2000, scoped, tag = 'output window, operand 0']
    #allocation3 [shape = 's32[2]{0}', space=sflag, size = 0x8, scoped, tag = 'scoped memory for tpu_custom_call.1']
    %11 = vsyncpa [#allocation3], 0
    %s12 = scalar_lea.sflag [#allocation3], 1
    %13 = vsyncpa %s12, 0
    loop: start=0, step=1, limit=4
    $region2: #{tpu_custom_call.1} parent=1 // loop_pre_header
      _
    $region3: #{tpu_custom_call.1} parent=1 // loop_header
      %s15 = sphi 0, %s19
      %p16 = scmp.ge.s32.totalorder %s15, 4
      %s25 = sphi 0, %s27
      %s28 = sphi 0, %s25
      %s29 = sphi 0, %s28
      %s45 = sphi 0, %s29
      %s49 = sphi 0, %s49
      %s51 = sphi 0, %s49
      %s52 = sphi 0, %s51
      %s66 = sphi 0, %s52
      %s70 = sphi 0, %s70
      %s72 = sphi 0, %s70
      %s73 = sphi 0, %s72
      %s87 = sphi 0, %s73
      %s91 = sphi 0, %s91
      %s93 = sphi 0, %s91
      %s94 = sphi 0, %s93
      %s108 = sphi 0, %s94
      %s112 = sphi 0, %s112
      %s114 = sphi 0, %s112
      %s115 = sphi 0, %s114
      %s129 = sphi 0, %s115
      %s133 = sphi 0, %s133
      %s135 = sphi 0, %s133
      %s136 = sphi 0, %s135
      %s150 = sphi 0, %s136
      %s156 = sphi 0, %s158
      %s159 = sphi 0, %s156
      %s160 = sphi 0, %s159
      %s176 = sphi 0, %s160
    $region4: #{tpu_custom_call.1} parent=1 // loop_header_branch
      %18 = sbr.rel (%p16) target = $region8
    $region5: #{tpu_custom_call.1} parent=1 // loop_body
      %s20 = ssub.s32 %s15, 1
      %s21 = ssub.s32 %s15, 2
      %s22 = sadd.s32 %s15, 1
      %s23 = ssub.s32 %s15, %s22
      %p24 = scmp.eq.s32.totalorder %s23, 0
      %s26 = sadd.s32 %s25, 1
      %s27 = scalar_select %p24, %s25, %s26
      %p30 = pneg %p24
      %p31 = scmp.eq.s32.totalorder %s15, 1
      %p32 = por %p30, %p31
      %p33 = scmp.ne.s32.totalorder %s25, %s28
      %p34 = scmp.eq.s32.totalorder %s15, 0
      %p35 = por %p33, %p34
      %p36 = scmp.ne.s32.totalorder %s25, %s28
      %p37 = scmp.eq.s32.totalorder %s20, 1
      %p38 = por %p36, %p37
      %p39 = scmp.ne.s32.totalorder %s28, %s29
      %p40 = scmp.eq.s32.totalorder %s20, 0
      %p41 = por %p39, %p40
      %p42 = scmp.ne.s32.totalorder %s28, %s29
      %p43 = scmp.eq.s32.totalorder %s21, 1
      %p44 = por %p42, %p43
      %p46 = scmp.ne.s32.totalorder %s29, %s45
      %p47 = scmp.eq.s32.totalorder %s21, 0
      %p48 = por %p46, %p47
      %s50 = sadd.s32 %s49, 1
      %p53 = scmp.eq.s32.totalorder %s15, 1
      %p54 = scmp.ne.s32.totalorder %s49, %s51
      %p55 = scmp.eq.s32.totalorder %s15, 0
      %p56 = por %p54, %p55
      %p57 = scmp.ne.s32.totalorder %s49, %s51
      %p58 = scmp.eq.s32.totalorder %s20, 1
      %p59 = por %p57, %p58
      %p60 = scmp.ne.s32.totalorder %s51, %s52
      %p61 = scmp.eq.s32.totalorder %s20, 0
      %p62 = por %p60, %p61
      %p63 = scmp.ne.s32.totalorder %s51, %s52
      %p64 = scmp.eq.s32.totalorder %s21, 1
      %p65 = por %p63, %p64
      %p67 = scmp.ne.s32.totalorder %s52, %s66
      %p68 = scmp.eq.s32.totalorder %s21, 0
      %p69 = por %p67, %p68
      %s71 = sadd.s32 %s70, 1
      %p74 = scmp.eq.s32.totalorder %s15, 1
      %p75 = scmp.ne.s32.totalorder %s70, %s72
      %p76 = scmp.eq.s32.totalorder %s15, 0
      %p77 = por %p75, %p76
      %p78 = scmp.ne.s32.totalorder %s70, %s72
      %p79 = scmp.eq.s32.totalorder %s20, 1
      %p80 = por %p78, %p79
      %p81 = scmp.ne.s32.totalorder %s72, %s73
      %p82 = scmp.eq.s32.totalorder %s20, 0
      %p83 = por %p81, %p82
      %p84 = scmp.ne.s32.totalorder %s72, %s73
      %p85 = scmp.eq.s32.totalorder %s21, 1
      %p86 = por %p84, %p85
      %p88 = scmp.ne.s32.totalorder %s73, %s87
      %p89 = scmp.eq.s32.totalorder %s21, 0
      %p90 = por %p88, %p89
      %s92 = sadd.s32 %s91, 1
      %p95 = scmp.eq.s32.totalorder %s15, 1
      %p96 = scmp.ne.s32.totalorder %s91, %s93
      %p97 = scmp.eq.s32.totalorder %s15, 0
      %p98 = por %p96, %p97
      %p99 = scmp.ne.s32.totalorder %s91, %s93
      %p100 = scmp.eq.s32.totalorder %s20, 1
      %p101 = por %p99, %p100
      %p102 = scmp.ne.s32.totalorder %s93, %s94
      %p103 = scmp.eq.s32.totalorder %s20, 0
      %p104 = por %p102, %p103
      %p105 = scmp.ne.s32.totalorder %s93, %s94
      %p106 = scmp.eq.s32.totalorder %s21, 1
      %p107 = por %p105, %p106
      %p109 = scmp.ne.s32.totalorder %s94, %s108
      %p110 = scmp.eq.s32.totalorder %s21, 0
      %p111 = por %p109, %p110
      %s113 = sadd.s32 %s112, 1
      %p116 = scmp.eq.s32.totalorder %s15, 1
      %p117 = scmp.ne.s32.totalorder %s112, %s114
      %p118 = scmp.eq.s32.totalorder %s15, 0
      %p119 = por %p117, %p118
      %p120 = scmp.ne.s32.totalorder %s112, %s114
      %p121 = scmp.eq.s32.totalorder %s20, 1
      %p122 = por %p120, %p121
      %p123 = scmp.ne.s32.totalorder %s114, %s115
      %p124 = scmp.eq.s32.totalorder %s20, 0
      %p125 = por %p123, %p124
      %p126 = scmp.ne.s32.totalorder %s114, %s115
      %p127 = scmp.eq.s32.totalorder %s21, 1
      %p128 = por %p126, %p127
      %p130 = scmp.ne.s32.totalorder %s115, %s129
      %p131 = scmp.eq.s32.totalorder %s21, 0
      %p132 = por %p130, %p131
      %s134 = sadd.s32 %s133, 1
      %p137 = scmp.eq.s32.totalorder %s15, 1
      %p138 = scmp.ne.s32.totalorder %s133, %s135
      %p139 = scmp.eq.s32.totalorder %s15, 0
      %p140 = por %p138, %p139
      %p141 = scmp.ne.s32.totalorder %s133, %s135
      %p142 = scmp.eq.s32.totalorder %s20, 1
      %p143 = por %p141, %p142
      %p144 = scmp.ne.s32.totalorder %s135, %s136
      %p145 = scmp.eq.s32.totalorder %s20, 0
      %p146 = por %p144, %p145
      %p147 = scmp.ne.s32.totalorder %s135, %s136
      %p148 = scmp.eq.s32.totalorder %s21, 1
      %p149 = por %p147, %p148
      %p151 = scmp.ne.s32.totalorder %s136, %s150
      %p152 = scmp.eq.s32.totalorder %s21, 0
      %p153 = por %p151, %p152
      %s154 = ssub.s32 %s15, %s22
      %p155 = scmp.eq.s32.totalorder %s154, 0
      %s157 = sadd.s32 %s156, 1
      %s158 = scalar_select %p155, %s156, %s157
      %p161 = pneg %p155
      %p162 = scmp.eq.s32.totalorder %s15, 1
      %p163 = por %p161, %p162
      %p164 = scmp.ne.s32.totalorder %s156, %s159
      %p165 = scmp.eq.s32.totalorder %s15, 0
      %p166 = por %p164, %p165
      %p167 = scmp.ne.s32.totalorder %s156, %s159
      %p168 = scmp.eq.s32.totalorder %s20, 1
      %p169 = por %p167, %p168
      %p170 = scmp.ne.s32.totalorder %s159, %s160
      %p171 = scmp.eq.s32.totalorder %s20, 0
      %p172 = por %p170, %p171
      %p173 = scmp.ne.s32.totalorder %s159, %s160
      %p174 = scmp.eq.s32.totalorder %s21, 1
      %p175 = por %p173, %p174
      %p177 = scmp.ne.s32.totalorder %s160, %s176
      %p178 = scmp.eq.s32.totalorder %s21, 0
      %p179 = por %p177, %p178
      %p180 = scmp.le.s32.totalorder 1, %s15
      %p181 = scmp.lt.s32.totalorder %s15, 3
      %p182 = pnand %p180, %p181
      %p183 = pneg %p182
      // Predicated region
      $region9: #{tpu_custom_call.1} parent=5 // pred_check
        _
      $region10: #{tpu_custom_call.1} parent=5 // pred_check_branch
        %185 = sbr.rel (%p182) target = $region12
      $region11: #{tpu_custom_call.1} parent=5 // pred_region
        %s186 = ssub.s32 %s15, 1
        // Predicated region
        $region13: #{tpu_custom_call.1} parent=11 // pred_check
          %p187 = pneg %p62
        $region14: #{tpu_custom_call.1} parent=11 // pred_check_branch
          %189 = sbr.rel (%p187) target = $region16
        $region15: #{tpu_custom_call.1} parent=11 // pred_region
          _
        $region16: #{tpu_custom_call.1} parent=11 // pred_fallthru
          _
        // Predicated region
        $region17: #{tpu_custom_call.1} parent=11 // pred_check
          %p190 = pneg %p83
        $region18: #{tpu_custom_call.1} parent=11 // pred_check_branch
          %192 = sbr.rel (%p190) target = $region20
        $region19: #{tpu_custom_call.1} parent=11 // pred_region
          _
        $region20: #{tpu_custom_call.1} parent=11 // pred_fallthru
          _
        // Predicated region
        $region21: #{tpu_custom_call.1} parent=11 // pred_check
          %p193 = pneg %p104
        $region22: #{tpu_custom_call.1} parent=11 // pred_check_branch
          %195 = sbr.rel (%p193) target = $region24
        $region23: #{tpu_custom_call.1} parent=11 // pred_region
          _
        $region24: #{tpu_custom_call.1} parent=11 // pred_fallthru
          _
        // Predicated region
        $region25: #{tpu_custom_call.1} parent=11 // pred_check
          %p196 = pneg %p125
        $region26: #{tpu_custom_call.1} parent=11 // pred_check_branch
          %198 = sbr.rel (%p196) target = $region28
        $region27: #{tpu_custom_call.1} parent=11 // pred_region
          _
        $region28: #{tpu_custom_call.1} parent=11 // pred_fallthru
          _
        // Predicated region
        $region29: #{tpu_custom_call.1} parent=11 // pred_check
          %p199 = pneg %p146
        $region30: #{tpu_custom_call.1} parent=11 // pred_check_branch
          %201 = sbr.rel (%p199) target = $region32
        $region31: #{tpu_custom_call.1} parent=11 // pred_region
          _
        $region32: #{tpu_custom_call.1} parent=11 // pred_fallthru
          _
      $region12: #{tpu_custom_call.1} parent=5 // pred_fallthru
        _
      %p202 = scmp.lt.s32.totalorder %s15, 2
      // Predicated region
      $region33: #{tpu_custom_call.1} parent=5 // pred_check
        %p203 = pneg %p202
      $region34: #{tpu_custom_call.1} parent=5 // pred_check_branch
        %205 = sbr.rel (%p203) target = $region36
      $region35: #{tpu_custom_call.1} parent=5 // pred_region
        // Predicated region
        $region37: #{tpu_custom_call.1} parent=35 // pred_check
          %p206 = pneg %p35
        $region38: #{tpu_custom_call.1} parent=35 // pred_check_branch
          %208 = sbr.rel (%p206) target = $region40
        $region39: #{tpu_custom_call.1} parent=35 // pred_region
          %p209 = scmp.lt.s32.totalorder %s15, 1
          %s210 = scalar_select %p209, %s15, 1
          %s211 = smul.addr %s210, 8
          %s212 = scalar_lea.vmem %s0, %s211
        $region40: #{tpu_custom_call.1} parent=35 // pred_fallthru
          _
      $region36: #{tpu_custom_call.1} parent=5 // pred_fallthru
        _
      %p213 = scmp.le.s32.totalorder 1, %s15
      %p214 = scmp.lt.s32.totalorder %s15, 3
      %p215 = pnand %p213, %p214
      %p216 = pneg %p215
      // Predicated region
      $region41: #{tpu_custom_call.1} parent=5 // pred_check
        _
      $region42: #{tpu_custom_call.1} parent=5 // pred_check_branch
        %218 = sbr.rel (%p215) target = $region44
      $region43: #{tpu_custom_call.1} parent=5 // pred_region
        %s219 = ssub.s32 %s15, 1
        %p220 = scmp.lt.s32.totalorder %s20, 1
        %s221 = scalar_select %p220, %s20, 1
        %s222 = smul.addr %s221, 8
        %s223 = scalar_lea.vmem %s0, %s222
        %p224 = pneg %p41
        %p225 = pneg %p38
        %p226 = pneg %p62
        %p227 = pneg %p59
        %p228 = pneg %p83
        %p229 = pneg %p80
        %p230 = pneg %p104
        %p231 = pneg %p101
        %p232 = pneg %p125
        %p233 = pneg %p122
        %p234 = pneg %p146
        %p235 = pneg %p143
        %p236 = pneg %p172
        %p237 = pneg %p169
        %s238 = sand.u32 %s159, 1
        %s239 = scalar_lea.sflag [#allocation3], %s238
        %s240 = sand.u32 %s159, 1
        %s241 = smul.addr %s240, 8
        %s242 = scalar_lea.vmem [#allocation2], %s241
        %p243 = scmp.lt.s32.totalorder %s20, 1
        %s244 = scalar_select %p243, %s20, 1
        %s245 = smul.addr %s244, 8
        %s246 = scalar_lea.vmem %s0, %s245
        %v248 = vld [vmem:[%s246] sm:$0xff]
        %vm249 = vcmask 261120
        %v250 = vsel %vm249, %v248, 0.0
        %251 = vadd.xlane.f32.xlu0 %v250
        %v252 = vpop.xlane.xlu0 %251
        %v253 = vrcp.pop 32.0
        %v254 = vmul.f32 32.0, %v253
        %v255 = vsub.f32 1.0, %v254
        %v256 = vmul.f32 %v253, %v255
        %v257 = vadd.f32 %v253, %v256
        %vm258 = vweird.f32 %v253
        %v259 = vsel %vm258, %v253, %v257
        %v260 = vmul.f32 %v252, %v259
        %v261 = vsub.f32 %v248, %v260
        %v262 = vmul.f32 %v261, %v261
        %v263 = vsel %vm249, %v262, 0.0
        %264 = vadd.xlane.f32.xlu0 %v263
        %v265 = vpop.xlane.xlu0 %264
        %v266 = vmul.f32 %v265, %v259
        %v267 = vadd.f32 %v266, 1e-05
        %v268 = vrsqrt.pop %v267
        %v269 = vmul.f32 %v268, %v267
        %v270 = vmul.f32 %v269, %v268
        %v271 = vmul.f32 0.5, %v270
        %v272 = vsub.f32 1.5, %v271
        %v273 = vmul.f32 %v268, %v272
        %vm274 = vweird.f32 %v267
        %vm275 = vweird.f32 %v268
        %vm276 = vmor %vm274, %vm275
        %v277 = vsel %vm276, %v268, %v273
        %v278 = vmul.f32 %v261, %v277
        %v279 = vld [vmem:[%s1] sm:$0x1]
        %v281 = vperm.slane %v279, 0
        %v283 = vmul.f32 %v278, %v281
        %v284 = vld [vmem:[%s2] sm:$0x1]
        %v286 = vperm.slane %v284, 0
        %v288 = vadd.f32 %v283, %v286
        %v289 = vpack.c.bf16 %v288, %v288
        %v290 = vld [vmem:[%s3] sm:$0xff]
        %v291 = vld [vmem:[%s3 + $0x8] sm:$0xff]
        %v292 = vld [vmem:[%s3 + $0x10] sm:$0xff]
        %v293 = vld [vmem:[%s3 + $0x18] sm:$0xff]
        %v298 = vunpack.c.l.b16 %v290
        %v299 = vunpack.c.h.b16 %v290
        %v300 = vunpack.c.l.b16 %v291
        %v301 = vunpack.c.h.b16 %v291
        %v302 = vunpack.c.l.b16 %v292
        %v303 = vunpack.c.h.b16 %v292
        %v304 = vunpack.c.l.b16 %v293
        %v305 = vunpack.c.h.b16 %v293
        %v306 = vpack.c.b16 %v300, %v298
        %v307 = vpack.c.b16 %v301, %v299
        %v308 = vpack.c.b16 %v304, %v302
        %v309 = vpack.c.b16 %v305, %v303
        %v315 = vsel %vm249, %v289, 0
        %317 = vmatpush.bf16.msra.mxu0 0
        %318 = vmatpush.bf16.msra.mxu0 0
        %319 = vmatpush.bf16.msra.mxu0 0
        %320 = vmatpush.bf16.msra.mxu0 0
        %321 = vmatpush.bf16.msra.mxu0 0
        %322 = vmatpush.bf16.msra.mxu0 0
        %323 = vmatpush.bf16.msra.mxu0 %v308
        %324 = vmatpush.bf16.msra.mxu0 %v306
        %325 = vmatmul.bf16.gmra.mxu0 %v315
        %v326 = vpop.f32.mrf.mxu0
        %v327 = vadd.f32 0.0, %v326
        %v328 = vpop.f32.mrf.mxu0
        %329 = vdwg.mxu0
        %330 = vmatpush.bf16.msra.mxu0 0
        %331 = vmatpush.bf16.msra.mxu0 0
        %332 = vmatpush.bf16.msra.mxu0 0
        %333 = vmatpush.bf16.msra.mxu0 0
        %334 = vmatpush.bf16.msra.mxu0 0
        %335 = vmatpush.bf16.msra.mxu0 0
        %336 = vmatpush.bf16.msra.mxu0 %v309
        %337 = vmatpush.bf16.msra.mxu0 %v307
        %338 = vmatmul.bf16.gmra.mxu0 %v315
        %v339 = vpop.f32.mrf.mxu0
        %v340 = vadd.f32 0.0, %v339
        %v341 = vpop.f32.mrf.mxu0
        %342 = vdwg.mxu0
        %v344 = vrot.slane %v327, 6
        %345 = vrot.lane.b32.xlu0 %v344, 112
        %v346 = vpop.permute.xlu0 %345
        %v348 = vrot.slane %v327, 4
        %349 = vrot.lane.b32.xlu0 %v348, 96
        %v350 = vpop.permute.xlu0 %349
        %v352 = vrot.slane %v327, 2
        %353 = vrot.lane.b32.xlu0 %v352, 80
        %v354 = vpop.permute.xlu0 %353
        %vm356 = vcmask 1041408
        %v357 = vsel %vm356, %v327, %v346
        %vm358 = vcmask 1043456
        %v359 = vsel %vm358, %v357, %v350
        %vm360 = vcmask 1045504
        %v361 = vsel %vm360, %v359, %v354
        %v363 = vrot.slane %v340, 6
        %364 = vrot.lane.b32.xlu0 %v363, 112
        %v365 = vpop.permute.xlu0 %364
        %v367 = vrot.slane %v340, 4
        %368 = vrot.lane.b32.xlu0 %v367, 96
        %v369 = vpop.permute.xlu0 %368
        %v371 = vrot.slane %v340, 2
        %372 = vrot.lane.b32.xlu0 %v371, 80
        %v373 = vpop.permute.xlu0 %372
        %v375 = vsel %vm356, %v340, %v365
        %v376 = vsel %vm358, %v375, %v369
        %v377 = vsel %vm360, %v376, %v373
        %379 = vrot.lane.b32.xlu0 %v327, 112
        %v380 = vpop.permute.xlu0 %379
        %382 = vrot.lane.b32.xlu0 %v344, 96
        %v383 = vpop.permute.xlu0 %382
        %385 = vrot.lane.b32.xlu0 %v348, 80
        %v386 = vpop.permute.xlu0 %385
        %v388 = vsel %vm356, %v352, %v380
        %v389 = vsel %vm358, %v388, %v383
        %v390 = vsel %vm360, %v389, %v386
        %392 = vrot.lane.b32.xlu0 %v340, 112
        %v393 = vpop.permute.xlu0 %392
        %395 = vrot.lane.b32.xlu0 %v363, 96
        %v396 = vpop.permute.xlu0 %395
        %398 = vrot.lane.b32.xlu0 %v367, 80
        %v399 = vpop.permute.xlu0 %398
        %v401 = vsel %vm356, %v371, %v393
        %v402 = vsel %vm358, %v401, %v396
        %v403 = vsel %vm360, %v402, %v399
        %405 = vrot.lane.b32.xlu0 %v352, 112
        %v406 = vpop.permute.xlu0 %405
        %408 = vrot.lane.b32.xlu0 %v327, 96
        %v409 = vpop.permute.xlu0 %408
        %411 = vrot.lane.b32.xlu0 %v344, 80
        %v412 = vpop.permute.xlu0 %411
        %v414 = vsel %vm356, %v348, %v406
        %v415 = vsel %vm358, %v414, %v409
        %v416 = vsel %vm360, %v415, %v412
        %418 = vrot.lane.b32.xlu0 %v371, 112
        %v419 = vpop.permute.xlu0 %418
        %421 = vrot.lane.b32.xlu0 %v340, 96
        %v422 = vpop.permute.xlu0 %421
        %424 = vrot.lane.b32.xlu0 %v363, 80
        %v425 = vpop.permute.xlu0 %424
        %v427 = vsel %vm356, %v367, %v419
        %v428 = vsel %vm358, %v427, %v422
        %v429 = vsel %vm360, %v428, %v425
        %431 = vrot.lane.b32.xlu0 %v348, 112
        %v432 = vpop.permute.xlu0 %431
        %434 = vrot.lane.b32.xlu0 %v352, 96
        %v435 = vpop.permute.xlu0 %434
        %437 = vrot.lane.b32.xlu0 %v327, 80
        %v438 = vpop.permute.xlu0 %437
        %v440 = vsel %vm356, %v344, %v432
        %v441 = vsel %vm358, %v440, %v435
        %v442 = vsel %vm360, %v441, %v438
        %444 = vrot.lane.b32.xlu0 %v367, 112
        %v445 = vpop.permute.xlu0 %444
        %447 = vrot.lane.b32.xlu0 %v371, 96
        %v448 = vpop.permute.xlu0 %447
        %450 = vrot.lane.b32.xlu0 %v340, 80
        %v451 = vpop.permute.xlu0 %450
        %v453 = vsel %vm356, %v363, %v445
        %v454 = vsel %vm358, %v453, %v448
        %v455 = vsel %vm360, %v454, %v451
        %v456 = vmul.f32 %v361, 0.25
        %v457 = vmul.f32 %v390, 0.25
        %v458 = vmul.f32 %v416, 0.25
        %v459 = vmul.f32 %v442, 0.25
        %v460 = vpack.c.bf16 %v456, %v456
        %v461 = vpack.c.bf16 %v457, %v457
        %v462 = vpack.c.bf16 %v458, %v458
        %v463 = vpack.c.bf16 %v459, %v459
        %v464 = vpack.c.bf16 %v361, %v361
        %v465 = vpack.c.bf16 %v390, %v390
        %v466 = vpack.c.bf16 %v416, %v416
        %v467 = vpack.c.bf16 %v442, %v442
        %v468 = vpack.c.bf16 %v377, %v377
        %v469 = vpack.c.bf16 %v403, %v403
        %v470 = vpack.c.bf16 %v429, %v429
        %v471 = vpack.c.bf16 %v455, %v455
        %v473 = vunpack.c.l.b16 %v464
        %v474 = vpack.c.b16 %v473, %v473
        %475 = vrot.lane.b32.xlu0 %v474, 64
        %v476 = vpop.permute.xlu0 %475
        %vm477 = vcmask 130048
        %v479 = vsel %vm477, %v460, 0
        %v482 = vsel %vm477, %v476, 0
        %484 = vmatpush.bf16.xpose.msra.mxu0 0
        %485 = vmatpush.bf16.xpose.msra.mxu0 0
        %486 = vmatpush.bf16.xpose.msra.mxu0 0
        %487 = vmatpush.bf16.xpose.msra.mxu0 0
        %488 = vmatpush.bf16.xpose.msra.mxu0 0
        %489 = vmatpush.bf16.xpose.msra.mxu0 0
        %490 = vmatpush.bf16.xpose.msra.mxu0 0
        %491 = vmatpush.bf16.xpose.msra.mxu0 %v482
        %492 = vmatmul.bf16.gmra.mxu0 %v479
        %v493 = vpop.f32.mrf.mxu0
        %v494 = vadd.f32 0.0, %v493
        %v495 = vpop.f32.mrf.mxu0
        %496 = vdwg.mxu0
        %v498 = vunpack.c.l.b16 %v465
        %v499 = vpack.c.b16 %v498, %v498
        %500 = vrot.lane.b32.xlu0 %v499, 64
        %v501 = vpop.permute.xlu0 %500
        %v503 = vsel %vm477, %v461, 0
        %v506 = vsel %vm477, %v501, 0
        %508 = vmatpush.bf16.xpose.msra.mxu0 0
        %509 = vmatpush.bf16.xpose.msra.mxu0 0
        %510 = vmatpush.bf16.xpose.msra.mxu0 0
        %511 = vmatpush.bf16.xpose.msra.mxu0 0
        %512 = vmatpush.bf16.xpose.msra.mxu0 0
        %513 = vmatpush.bf16.xpose.msra.mxu0 0
        %514 = vmatpush.bf16.xpose.msra.mxu0 0
        %515 = vmatpush.bf16.xpose.msra.mxu0 %v506
        %516 = vmatmul.bf16.gmra.mxu0 %v503
        %v517 = vpop.f32.mrf.mxu0
        %v518 = vadd.f32 0.0, %v517
        %v519 = vpop.f32.mrf.mxu0
        %520 = vdwg.mxu0
        %v522 = vunpack.c.l.b16 %v466
        %v523 = vpack.c.b16 %v522, %v522
        %524 = vrot.lane.b32.xlu0 %v523, 64
        %v525 = vpop.permute.xlu0 %524
        %v527 = vsel %vm477, %v462, 0
        %v530 = vsel %vm477, %v525, 0
        %532 = vmatpush.bf16.xpose.msra.mxu0 0
        %533 = vmatpush.bf16.xpose.msra.mxu0 0
        %534 = vmatpush.bf16.xpose.msra.mxu0 0
        %535 = vmatpush.bf16.xpose.msra.mxu0 0
        %536 = vmatpush.bf16.xpose.msra.mxu0 0
        %537 = vmatpush.bf16.xpose.msra.mxu0 0
        %538 = vmatpush.bf16.xpose.msra.mxu0 0
        %539 = vmatpush.bf16.xpose.msra.mxu0 %v530
        %540 = vmatmul.bf16.gmra.mxu0 %v527
        %v541 = vpop.f32.mrf.mxu0
        %v542 = vadd.f32 0.0, %v541
        %v543 = vpop.f32.mrf.mxu0
        %544 = vdwg.mxu0
        %v546 = vunpack.c.l.b16 %v467
        %v547 = vpack.c.b16 %v546, %v546
        %548 = vrot.lane.b32.xlu0 %v547, 64
        %v549 = vpop.permute.xlu0 %548
        %v551 = vsel %vm477, %v463, 0
        %v554 = vsel %vm477, %v549, 0
        %556 = vmatpush.bf16.xpose.msra.mxu0 0
        %557 = vmatpush.bf16.xpose.msra.mxu0 0
        %558 = vmatpush.bf16.xpose.msra.mxu0 0
        %559 = vmatpush.bf16.xpose.msra.mxu0 0
        %560 = vmatpush.bf16.xpose.msra.mxu0 0
        %561 = vmatpush.bf16.xpose.msra.mxu0 0
        %562 = vmatpush.bf16.xpose.msra.mxu0 0
        %563 = vmatpush.bf16.xpose.msra.mxu0 %v554
        %564 = vmatmul.bf16.gmra.mxu0 %v551
        %v565 = vpop.f32.mrf.mxu0
        %v566 = vadd.f32 0.0, %v565
        %v567 = vpop.f32.mrf.mxu0
        %568 = vdwg.mxu0
        %vm569 = vcmask 64512
        %v570 = vsel %vm569, %v494, -inf
        %571 = vmax.xlane.f32.xlu0 %v570
        %v572 = vpop.xlane.xlu0 %571
        %v573 = vsel %vm569, %v518, -inf
        %574 = vmax.xlane.f32.xlu0 %v573
        %v575 = vpop.xlane.xlu0 %574
        %v576 = vsel %vm569, %v542, -inf
        %577 = vmax.xlane.f32.xlu0 %v576
        %v578 = vpop.xlane.xlu0 %577
        %v579 = vsel %vm569, %v566, -inf
        %580 = vmax.xlane.f32.xlu0 %v579
        %v581 = vpop.xlane.xlu0 %580
        %v582 = vsub.f32 %v494, %v572
        %v583 = vsub.f32 %v518, %v575
        %v584 = vsub.f32 %v542, %v578
        %v585 = vsub.f32 %v566, %v581
        %v586 = vmul.f32 %v582, 1.442695
        %v587 = vpow.pop %v586
        %v588 = vmul.f32 %v583, 1.442695
        %v589 = vpow.pop %v588
        %v590 = vmul.f32 %v584, 1.442695
        %v591 = vpow.pop %v590
        %v592 = vmul.f32 %v585, 1.442695
        %v593 = vpow.pop %v592
        %v594 = vsel %vm569, %v587, 0.0
        %595 = vadd.xlane.f32.xlu0 %v594
        %v596 = vpop.xlane.xlu0 %595
        %v597 = vsel %vm569, %v589, 0.0
        %598 = vadd.xlane.f32.xlu0 %v597
        %v599 = vpop.xlane.xlu0 %598
        %v600 = vsel %vm569, %v591, 0.0
        %601 = vadd.xlane.f32.xlu0 %v600
        %v602 = vpop.xlane.xlu0 %601
        %v603 = vsel %vm569, %v593, 0.0
        %604 = vadd.xlane.f32.xlu0 %v603
        %v605 = vpop.xlane.xlu0 %604
        %v606 = vpack.c.bf16 %v587, %v587
        %v607 = vpack.c.bf16 %v589, %v589
        %v608 = vpack.c.bf16 %v591, %v591
        %v609 = vpack.c.bf16 %v593, %v593
        %v611 = vsel %vm569, %v606, 0
        %v614 = vsel %vm358, %v468, 0
        %616 = vmatpush.bf16.msra.mxu0 0
        %617 = vmatpush.bf16.msra.mxu0 0
        %618 = vmatpush.bf16.msra.mxu0 0
        %619 = vmatpush.bf16.msra.mxu0 0
        %620 = vmatpush.bf16.msra.mxu0 0
        %621 = vmatpush.bf16.msra.mxu0 0
        %622 = vmatpush.bf16.msra.mxu0 0
        %623 = vmatpush.bf16.msra.mxu0 %v614
        %624 = vmatmul.bf16.gmra.mxu0 %v611
        %v625 = vpop.f32.mrf.mxu0
        %v626 = vadd.f32 0.0, %v625
        %v627 = vpop.f32.mrf.mxu0
        %628 = vdwg.mxu0
        %v630 = vsel %vm569, %v607, 0
        %v633 = vsel %vm358, %v469, 0
        %635 = vmatpush.bf16.msra.mxu0 0
        %636 = vmatpush.bf16.msra.mxu0 0
        %637 = vmatpush.bf16.msra.mxu0 0
        %638 = vmatpush.bf16.msra.mxu0 0
        %639 = vmatpush.bf16.msra.mxu0 0
        %640 = vmatpush.bf16.msra.mxu0 0
        %641 = vmatpush.bf16.msra.mxu0 0
        %642 = vmatpush.bf16.msra.mxu0 %v633
        %643 = vmatmul.bf16.gmra.mxu0 %v630
        %v644 = vpop.f32.mrf.mxu0
        %v645 = vadd.f32 0.0, %v644
        %v646 = vpop.f32.mrf.mxu0
        %647 = vdwg.mxu0
        %v649 = vsel %vm569, %v608, 0
        %v652 = vsel %vm358, %v470, 0
        %654 = vmatpush.bf16.msra.mxu0 0
        %655 = vmatpush.bf16.msra.mxu0 0
        %656 = vmatpush.bf16.msra.mxu0 0
        %657 = vmatpush.bf16.msra.mxu0 0
        %658 = vmatpush.bf16.msra.mxu0 0
        %659 = vmatpush.bf16.msra.mxu0 0
        %660 = vmatpush.bf16.msra.mxu0 0
        %661 = vmatpush.bf16.msra.mxu0 %v652
        %662 = vmatmul.bf16.gmra.mxu0 %v649
        %v663 = vpop.f32.mrf.mxu0
        %v664 = vadd.f32 0.0, %v663
        %v665 = vpop.f32.mrf.mxu0
        %666 = vdwg.mxu0
        %v668 = vsel %vm569, %v609, 0
        %v671 = vsel %vm358, %v471, 0
        %673 = vmatpush.bf16.msra.mxu0 0
        %674 = vmatpush.bf16.msra.mxu0 0
        %675 = vmatpush.bf16.msra.mxu0 0
        %676 = vmatpush.bf16.msra.mxu0 0
        %677 = vmatpush.bf16.msra.mxu0 0
        %678 = vmatpush.bf16.msra.mxu0 0
        %679 = vmatpush.bf16.msra.mxu0 0
        %680 = vmatpush.bf16.msra.mxu0 %v671
        %681 = vmatmul.bf16.gmra.mxu0 %v668
        %v682 = vpop.f32.mrf.mxu0
        %v683 = vadd.f32 0.0, %v682
        %v684 = vpop.f32.mrf.mxu0
        %685 = vdwg.mxu0
        %v686 = vrcp.pop %v596
        %v687 = vrcp.pop %v599
        %v688 = vrcp.pop %v602
        %v689 = vrcp.pop %v605
        %v690 = vmul.f32 %v626, %v686
        %v691 = vmul.f32 %v645, %v687
        %v692 = vmul.f32 %v664, %v688
        %v693 = vmul.f32 %v683, %v689
        %v695 = vrot.slane %v690, 2
        %696 = vrot.lane.b32.xlu0 %v695, 16
        %v697 = vpop.permute.xlu0 %696
        %v699 = vrot.slane %v690, 4
        %700 = vrot.lane.b32.xlu0 %v699, 32
        %v701 = vpop.permute.xlu0 %700
        %v703 = vrot.slane %v690, 6
        %704 = vrot.lane.b32.xlu0 %v703, 48
        %v705 = vpop.permute.xlu0 %704
        %v707 = vsel %vm477, %v690, %v697
        %v708 = vsel %vm249, %v707, %v701
        %vm709 = vcmask 392192
        %v710 = vsel %vm709, %v708, %v705
        %v712 = vrot.slane %v691, 2
        %713 = vrot.lane.b32.xlu0 %v712, 16
        %v714 = vpop.permute.xlu0 %713
        %v716 = vrot.slane %v691, 4
        %717 = vrot.lane.b32.xlu0 %v716, 32
        %v718 = vpop.permute.xlu0 %717
        %v720 = vrot.slane %v691, 6
        %721 = vrot.lane.b32.xlu0 %v720, 48
        %v722 = vpop.permute.xlu0 %721
        %v724 = vsel %vm477, %v691, %v714
        %v725 = vsel %vm249, %v724, %v718
        %v726 = vsel %vm709, %v725, %v722
        %v728 = vrot.slane %v692, 2
        %729 = vrot.lane.b32.xlu0 %v728, 16
        %v730 = vpop.permute.xlu0 %729
        %v732 = vrot.slane %v692, 4
        %733 = vrot.lane.b32.xlu0 %v732, 32
        %v734 = vpop.permute.xlu0 %733
        %v736 = vrot.slane %v692, 6
        %737 = vrot.lane.b32.xlu0 %v736, 48
        %v738 = vpop.permute.xlu0 %737
        %v740 = vsel %vm477, %v692, %v730
        %v741 = vsel %vm249, %v740, %v734
        %v742 = vsel %vm709, %v741, %v738
        %v744 = vrot.slane %v693, 2
        %745 = vrot.lane.b32.xlu0 %v744, 16
        %v746 = vpop.permute.xlu0 %745
        %v748 = vrot.slane %v693, 4
        %749 = vrot.lane.b32.xlu0 %v748, 32
        %v750 = vpop.permute.xlu0 %749
        %v752 = vrot.slane %v693, 6
        %753 = vrot.lane.b32.xlu0 %v752, 48
        %v754 = vpop.permute.xlu0 %753
        %v756 = vsel %vm477, %v693, %v746
        %v757 = vsel %vm249, %v756, %v750
        %v758 = vsel %vm709, %v757, %v754
        %v760 = vrot.slane %v726, 6
        %v763 = vrot.slane %v742, 4
        %v766 = vrot.slane %v758, 2
        %v768 = vsel %vm356, %v710, %v760
        %v769 = vsel %vm358, %v768, %v763
        %v770 = vsel %vm360, %v769, %v766
        %v771 = vpack.c.bf16 %v770, %v770
        %v772 = vld [vmem:[%s4] sm:$0xf]
        %v773 = vld [vmem:[%s4 + $0x4] sm:$0xf]
        %v774 = vld [vmem:[%s4 + $0x8] sm:$0xf]
        %v775 = vld [vmem:[%s4 + $0xc] sm:$0xf]
        %v776 = vld [vmem:[%s4 + $0x10] sm:$0xf]
        %v777 = vld [vmem:[%s4 + $0x14] sm:$0xf]
        %v778 = vld [vmem:[%s4 + $0x18] sm:$0xf]
        %v779 = vld [vmem:[%s4 + $0x1c] sm:$0xf]
        %v780 = vld [vmem:[%s5] sm:$0x1]
        %v782 = vperm.slane %v780, 0
        %v792 = vunpack.c.l.b16 %v772
        %v793 = vunpack.c.l.b16 %v773
        %v794 = vunpack.c.l.b16 %v774
        %v795 = vunpack.c.l.b16 %v775
        %v796 = vunpack.c.l.b16 %v776
        %v797 = vunpack.c.l.b16 %v777
        %v798 = vunpack.c.l.b16 %v778
        %v799 = vunpack.c.l.b16 %v779
        %v800 = vpack.c.b16 %v793, %v792
        %v801 = vpack.c.b16 %v795, %v794
        %v802 = vpack.c.b16 %v797, %v796
        %v803 = vpack.c.b16 %v799, %v798
        %vm808 = vcmask 523264
        %v810 = vsel %vm808, %v771, 0
        %812 = vmatpush.bf16.msra.mxu0 0
        %813 = vmatpush.bf16.msra.mxu0 0
        %814 = vmatpush.bf16.msra.mxu0 0
        %815 = vmatpush.bf16.msra.mxu0 0
        %816 = vmatpush.bf16.msra.mxu0 %v803
        %817 = vmatpush.bf16.msra.mxu0 %v802
        %818 = vmatpush.bf16.msra.mxu0 %v801
        %819 = vmatpush.bf16.msra.mxu0 %v800
        %820 = vmatmul.bf16.gmra.mxu0 %v810
        %v821 = vpop.f32.mrf.mxu0
        %v822 = vadd.f32 %v782, %v821
        %v823 = vpop.f32.mrf.mxu0
        %824 = vdwg.mxu0
        %825 = vst.msk [vmem:[%s242] sm:$0xff] %vm249, %v822
        %s826 = sand.u32 %s159, 1
        %s827 = scalar_lea.sflag [#allocation3], %s826
        %s828 = sand.u32 %s159, 1
        %s829 = smul.addr %s828, 8
        %s830 = scalar_lea.vmem [#allocation2], %s829
        // Predicated region
        $region45: #{tpu_custom_call.1} parent=43 // pred_check
          %p831 = pneg %p169
        $region46: #{tpu_custom_call.1} parent=43 // pred_check_branch
          %833 = sbr.rel (%p831) target = $region48
        $region47: #{tpu_custom_call.1} parent=43 // pred_region
          %835 = vsyncadd %s827, 0
          %s836 = smul.addr %s20, 8
          %s837 = scalar_lea.hbm %s6, %s836
          %s839 = sshll.u32 %s830, 4
          %s840 = int_to_ptr.vmem [resolvable:$true] %s839
          %s841 = sshll.u32 %s837, 4
          %s842 = int_to_ptr.hbm [resolvable:$true] %s841
          %844 = dma.vmem_to_hbm [thread:$0]  %s840, 128, %s842, %s827
        $region48: #{tpu_custom_call.1} parent=43 // pred_fallthru
          _
      $region44: #{tpu_custom_call.1} parent=5 // pred_fallthru
        _
      %p845 = scmp.le.s32.totalorder 2, %s15
      // Predicated region
      $region49: #{tpu_custom_call.1} parent=5 // pred_check
        %p846 = pneg %p845
      $region50: #{tpu_custom_call.1} parent=5 // pred_check_branch
        %848 = sbr.rel (%p846) target = $region52
      $region51: #{tpu_custom_call.1} parent=5 // pred_region
        %s849 = ssub.s32 %s15, 2
        // Predicated region
        $region53: #{tpu_custom_call.1} parent=51 // pred_check
          %p850 = pneg %p175
        $region54: #{tpu_custom_call.1} parent=51 // pred_check_branch
          %852 = sbr.rel (%p850) target = $region56
        $region55: #{tpu_custom_call.1} parent=51 // pred_region
          %s853 = sand.u32 %s160, 1
          %s854 = scalar_lea.sflag [#allocation3], %s853
          %s855 = sand.u32 %s160, 1
          %s856 = smul.addr %s855, 8
          %s857 = scalar_lea.vmem [#allocation2], %s856
          %859 = dma.done %s854, 128
        $region56: #{tpu_custom_call.1} parent=51 // pred_fallthru
          _
      $region52: #{tpu_custom_call.1} parent=5 // pred_fallthru
        _
    $region6: #{tpu_custom_call.1} parent=1 // loop_footer
      %s19 = sadd.s32 1, %s15
    $region7: #{tpu_custom_call.1} parent=1 // loop_footer_branch
      %14 = sbr.rel target = $region3
    $region8: #{tpu_custom_call.1} parent=1 // loop_exit
      _
    %860 = vsyncpa [#allocation3], 1
    %s861 = scalar_lea.sflag [#allocation3], 1
    %862 = vsyncpa %s861, 1

</llo_original>
